<compile_context>
chip_gen: v6e
topology: v6e:2x2x1
jax: 0.10.0
libtpu: 0.0.40
codegen_flags: <defaults>
</compile_context>

<pallas_src>
import jax
import jax.numpy as jnp
from jax.experimental import pallas as pl
from jax.experimental.pallas import tpu as pltpu


_FMA_MAX_FAN_IN = 8  # contractions at or below this width run on the VPU


def _round_up(x, m):
    return ((x + m - 1) // m) * m


def _fcblock_kernel(x_ref, *refs):
    """Fused MLP on one lane-major tile of the input.

    x_ref:  (in_features, tm)             activations, M on lanes
    refs =  (w0, b0, w1, b1, ..., out)    w_l: (fan_out, fan_in), b_l: (fan_out, 1)
    out:    (out_features, tm)
    """
    out_ref = refs[-1]
    wb_refs = refs[:-1]
    n_layers = len(wb_refs) // 2
    tm = out_ref.shape[-1]

    h = x_ref[...].astype(jnp.float32)                      # (fan_in, tm)
    for l in range(n_layers):
        w = wb_refs[2 * l][...].astype(jnp.float32)          # (fan_out, fan_in)
        b = wb_refs[2 * l + 1][...].astype(jnp.float32)      # (fan_out, 1)
        fan_out, fan_in = w.shape
        if fan_in <= _FMA_MAX_FAN_IN:
            # Tiny contraction (e.g. the 3-wide coords layer): broadcast
            # multiply-adds on the VPU instead of an almost-empty MXU pass.
            acc = jnp.broadcast_to(b, (fan_out, tm))
            for k in range(fan_in):
                acc = acc + w[:, k:k + 1] * h[k:k + 1, :]
            h = acc
        else:
            h = jnp.dot(w, h, preferred_element_type=jnp.float32) + b
        h = jnp.maximum(h, 0.0)  # ReLU after every layer (outermost_linear=False)
    out_ref[...] = h.astype(out_ref.dtype)


def fcblock_forward(x_flat, weights, biases, *, tm=512):
    """Run the fused FCBlock forward pass with a Pallas kernel.

    x_flat:  (M, in_features) float32
    weights: list of (fan_out, fan_in) matrices (natural torch layout)
    biases:  list of (fan_out, 1) column vectors
    Returns (M, out_features) float32.
    """
    M, in_features = x_flat.shape
    out_features = weights[-1].shape[0]

    # Lane-dense row tile: multiple of 128, no larger than the padded M.
    tm = max(128, _round_up(int(tm), 128))
    tm = min(tm, _round_up(M, 128))
    m_pad = _round_up(M, tm)
    grid = (m_pad // tm,)

    # Present the data feature-major so M rides the lane axis (layout plumbing
    # done once in the XLA wrapper).
    xt = x_flat.T                                   # (in_features, M)
    if m_pad != M:
        xt = jnp.pad(xt, ((0, 0), (0, m_pad - M)))

    in_specs = [pl.BlockSpec((in_features, tm), lambda i: (0, i))]
    operands = [xt]
    for w, b in zip(weights, biases):
        # Constant block index -> weights/biases stay resident in VMEM.
        in_specs.append(pl.BlockSpec(w.shape, lambda i: (0, 0)))
        in_specs.append(pl.BlockSpec(b.shape, lambda i: (0, 0)))
        operands.append(w)
        operands.append(b)

    out_spec = pl.BlockSpec((out_features, tm), lambda i: (0, i))

    out_t = pl.pallas_call(
        _fcblock_kernel,
        out_shape=jax.ShapeDtypeStruct((out_features, m_pad), jnp.float32),
        grid_spec=pltpu.PrefetchScalarGridSpec(
            num_scalar_prefetch=0,
            grid=grid,
            in_specs=in_specs,
            out_specs=out_spec,
        ),
        compiler_params=pltpu.CompilerParams(
            dimension_semantics=("parallel",),
        ),
    )(*operands)

    return out_t.T[:M]                               # (M, out_features)


def init_fcblock_params(key, in_features, out_features, num_hidden_layers,
                        hidden_features, dtype=jnp.float32):
    """Deterministic init matching FCBlock(relu): kaiming_uniform_ weights,
    default torch Linear bias init uniform(-1/sqrt(fan_in), 1/sqrt(fan_in)).

    Weights kept in the natural torch (fan_out, fan_in) layout; biases as
    (fan_out, 1) columns so they broadcast along lanes in the kernel.
    On v6e/v7x, passing dtype=jnp.bfloat16 halves weight DMA/VMEM (kernel
    still accumulates in f32); keep f32 on v5e.
    """
    dims = [in_features] + [hidden_features] * (num_hidden_layers + 1) + [out_features]
    weights, biases = [], []
    for l in range(len(dims) - 1):
        fan_in, fan_out = dims[l], dims[l + 1]
        key, kw, kb = jax.random.split(key, 3)
        w_bound = jnp.sqrt(6.0 / fan_in)             # kaiming_uniform_(relu)
        w = jax.random.uniform(kw, (fan_out, fan_in), jnp.float32,
                               minval=-w_bound, maxval=w_bound)
        b_bound = 1.0 / jnp.sqrt(fan_in)
        b = jax.random.uniform(kb, (fan_out,), jnp.float32,
                               minval=-b_bound, maxval=b_bound)
        weights.append(w.astype(dtype))
        biases.append(b.reshape(fan_out, 1).astype(dtype))
    return weights, biases


def fcblock_reference(x_flat, weights, biases):
    """Pure-JAX f32 reference. For the tiny-K first layer it mirrors the
    kernel's exact-f32 FMA formulation so the check is not dominated by XLA's
    default TPU matmul precision."""
    h = x_flat.astype(jnp.float32)
    for w, b in zip(weights, biases):
        w = w.astype(jnp.float32)
        b = b.astype(jnp.float32).reshape(1, -1)
        if w.shape[1] <= _FMA_MAX_FAN_IN:
            h = jnp.sum(h[:, None, :] * w[None, :, :], axis=-1) + b
        else:
            h = h @ w.T + b
        h = jnp.maximum(h, 0.0)
    return h


if __name__ == "__main__":
    # Small FCBlock config: in=3 (coords), hidden=32, 2 hidden layers, out=4.
    # TODO(synk): only the default ReLU path is implemented (sine/tanh/sigmoid
    # variants and dropout>0 of FCBlock are not translated).
    in_features, out_features = 3, 4
    num_hidden_layers, hidden_features = 2, 32

    key = jax.random.PRNGKey(0)
    key, kx1, kx2 = jax.random.split(key, 3)
    weights, biases = init_fcblock_params(
        key, in_features, out_features, num_hidden_layers, hidden_features)

    # Case 1: coords (2, 64, 3) -> M = 128 (single lane-dense grid step).
    coords = jax.random.normal(kx1, (2, 64, in_features), jnp.float32)
    x_flat = coords.reshape(-1, in_features)   # PyTorch Linear broadcasts leading dims
    out = fcblock_forward(x_flat, weights, biases, tm=512)
    jax.block_until_ready(out)
    ref = fcblock_reference(x_flat, weights, biases)
    assert jnp.allclose(out, ref, atol=1e-4, rtol=1e-4), "mismatch vs reference (case 1)"
    out3d = out.reshape(2, 64, out_features)

    # Case 2: non-tile-divisible M exercises padding + a multi-step grid.
    coords2 = jax.random.normal(kx2, (2, 300, in_features), jnp.float32)
    x2 = coords2.reshape(-1, in_features)      # M = 600 -> padded to 768, grid = 3
    out2 = fcblock_forward(x2, weights, biases, tm=256)
    jax.block_until_ready(out2)
    ref2 = fcblock_reference(x2, weights, biases)
    assert jnp.allclose(out2, ref2, atol=1e-4, rtol=1e-4), "mismatch vs reference (case 2)"

    print("KERNEL_OK")
</pallas_src>

<mosaic_0001>
module attributes {stable_mosaic.version = 11 : i64} {
  func.func @_fcblock_kernel(%arg0: i32, %arg1: memref<3x128xf32, #tpu.memory_space<vmem>>, %arg2: memref<32x3xf32, #tpu.memory_space<vmem>>, %arg3: memref<32x1xf32, #tpu.memory_space<vmem>>, %arg4: memref<32x32xf32, #tpu.memory_space<vmem>>, %arg5: memref<32x1xf32, #tpu.memory_space<vmem>>, %arg6: memref<32x32xf32, #tpu.memory_space<vmem>>, %arg7: memref<32x1xf32, #tpu.memory_space<vmem>>, %arg8: memref<4x32xf32, #tpu.memory_space<vmem>>, %arg9: memref<4x1xf32, #tpu.memory_space<vmem>>, %arg10: memref<4x128xf32, #tpu.memory_space<vmem>>) attributes {dimension_semantics = [#tpu.dimension_semantics<parallel>], iteration_bounds = array<i64: 1>, scalar_prefetch = 0 : i64, scratch_operands = 0 : i64, tpu.core_type = #tpu.core_type<tc>, window_params = [{transform_indices = @transform_0, window_bounds = array<i64: 3, 128>}, {pipeline_mode = #tpu.pipeline_mode<synchronous>, transform_indices = @transform_1, window_bounds = array<i64: 32, 3>}, {pipeline_mode = #tpu.pipeline_mode<synchronous>, transform_indices = @transform_2, window_bounds = array<i64: 32, 1>}, {pipeline_mode = #tpu.pipeline_mode<synchronous>, transform_indices = @transform_3, window_bounds = array<i64: 32, 32>}, {pipeline_mode = #tpu.pipeline_mode<synchronous>, transform_indices = @transform_4, window_bounds = array<i64: 32, 1>}, {pipeline_mode = #tpu.pipeline_mode<synchronous>, transform_indices = @transform_5, window_bounds = array<i64: 32, 32>}, {pipeline_mode = #tpu.pipeline_mode<synchronous>, transform_indices = @transform_6, window_bounds = array<i64: 32, 1>}, {pipeline_mode = #tpu.pipeline_mode<synchronous>, transform_indices = @transform_7, window_bounds = array<i64: 4, 32>}, {pipeline_mode = #tpu.pipeline_mode<synchronous>, transform_indices = @transform_8, window_bounds = array<i64: 4, 1>}, {transform_indices = @transform_9, window_bounds = array<i64: 4, 128>}]} {
    %c0 = arith.constant 0 : index
    %c0_0 = arith.constant 0 : index
    %0 = vector.load %arg1[%c0, %c0_0] : memref<3x128xf32, #tpu.memory_space<vmem>>, vector<3x128xf32>
    %c0_1 = arith.constant 0 : index
    %c0_2 = arith.constant 0 : index
    %1 = vector.load %arg2[%c0_1, %c0_2] : memref<32x3xf32, #tpu.memory_space<vmem>>, vector<32x3xf32>
    %c0_3 = arith.constant 0 : index
    %c0_4 = arith.constant 0 : index
    %2 = vector.load %arg3[%c0_3, %c0_4] : memref<32x1xf32, #tpu.memory_space<vmem>>, vector<32x1xf32>
    %3 = vector.shape_cast %2 : vector<32x1xf32> to vector<32x1xf32>
    %4 = vector.broadcast %3 : vector<32x1xf32> to vector<32x128xf32>
    %5 = vector.extract_strided_slice %1 {offsets = [0, 0], sizes = [32, 1], strides = [1, 1]} : vector<32x3xf32> to vector<32x1xf32>
    %6 = vector.extract_strided_slice %0 {offsets = [0, 0], sizes = [1, 128], strides = [1, 1]} : vector<3x128xf32> to vector<1x128xf32>
    %7 = vector.broadcast %5 : vector<32x1xf32> to vector<32x128xf32>
    %8 = vector.broadcast %6 : vector<1x128xf32> to vector<32x128xf32>
    %9 = arith.mulf %7, %8 : vector<32x128xf32>
    %10 = arith.addf %4, %9 : vector<32x128xf32>
    %11 = vector.extract_strided_slice %1 {offsets = [0, 1], sizes = [32, 1], strides = [1, 1]} : vector<32x3xf32> to vector<32x1xf32>
    %12 = vector.extract_strided_slice %0 {offsets = [1, 0], sizes = [1, 128], strides = [1, 1]} : vector<3x128xf32> to vector<1x128xf32>
    %13 = vector.broadcast %11 : vector<32x1xf32> to vector<32x128xf32>
    %14 = vector.broadcast %12 : vector<1x128xf32> to vector<32x128xf32>
    %15 = arith.mulf %13, %14 : vector<32x128xf32>
    %16 = arith.addf %10, %15 : vector<32x128xf32>
    %17 = vector.extract_strided_slice %1 {offsets = [0, 2], sizes = [32, 1], strides = [1, 1]} : vector<32x3xf32> to vector<32x1xf32>
    %18 = vector.extract_strided_slice %0 {offsets = [2, 0], sizes = [1, 128], strides = [1, 1]} : vector<3x128xf32> to vector<1x128xf32>
    %19 = vector.broadcast %17 : vector<32x1xf32> to vector<32x128xf32>
    %20 = vector.broadcast %18 : vector<1x128xf32> to vector<32x128xf32>
    %21 = arith.mulf %19, %20 : vector<32x128xf32>
    %22 = arith.addf %16, %21 : vector<32x128xf32>
    %cst = arith.constant 0.000000e+00 : f32
    %23 = vector.broadcast %cst : f32 to vector<32x128xf32>
    %24 = arith.maximumf %22, %23 : vector<32x128xf32>
    %c0_5 = arith.constant 0 : index
    %c0_6 = arith.constant 0 : index
    %25 = vector.load %arg4[%c0_5, %c0_6] : memref<32x32xf32, #tpu.memory_space<vmem>>, vector<32x32xf32>
    %c0_7 = arith.constant 0 : index
    %c0_8 = arith.constant 0 : index
    %26 = vector.load %arg5[%c0_7, %c0_8] : memref<32x1xf32, #tpu.memory_space<vmem>>, vector<32x1xf32>
    %cst_9 = arith.constant dense<0.000000e+00> : vector<32x128xf32>
    %27 = tpu.matmul %25, %24, %cst_9 {dimension_numbers = #tpu.dot_dimension_numbers<[1], [0], [0], [1], [0, 0, 1, 1], [], []>} : vector<32x32xf32>, vector<32x128xf32>, vector<32x128xf32> -> vector<32x128xf32>
    %28 = vector.broadcast %26 : vector<32x1xf32> to vector<32x128xf32>
    %29 = arith.addf %27, %28 : vector<32x128xf32>
    %cst_10 = arith.constant 0.000000e+00 : f32
    %30 = vector.broadcast %cst_10 : f32 to vector<32x128xf32>
    %31 = arith.maximumf %29, %30 : vector<32x128xf32>
    %c0_11 = arith.constant 0 : index
    %c0_12 = arith.constant 0 : index
    %32 = vector.load %arg6[%c0_11, %c0_12] : memref<32x32xf32, #tpu.memory_space<vmem>>, vector<32x32xf32>
    %c0_13 = arith.constant 0 : index
    %c0_14 = arith.constant 0 : index
    %33 = vector.load %arg7[%c0_13, %c0_14] : memref<32x1xf32, #tpu.memory_space<vmem>>, vector<32x1xf32>
    %cst_15 = arith.constant dense<0.000000e+00> : vector<32x128xf32>
    %34 = tpu.matmul %32, %31, %cst_15 {dimension_numbers = #tpu.dot_dimension_numbers<[1], [0], [0], [1], [0, 0, 1, 1], [], []>} : vector<32x32xf32>, vector<32x128xf32>, vector<32x128xf32> -> vector<32x128xf32>
    %35 = vector.broadcast %33 : vector<32x1xf32> to vector<32x128xf32>
    %36 = arith.addf %34, %35 : vector<32x128xf32>
    %cst_16 = arith.constant 0.000000e+00 : f32
    %37 = vector.broadcast %cst_16 : f32 to vector<32x128xf32>
    %38 = arith.maximumf %36, %37 : vector<32x128xf32>
    %c0_17 = arith.constant 0 : index
    %c0_18 = arith.constant 0 : index
    %39 = vector.load %arg8[%c0_17, %c0_18] : memref<4x32xf32, #tpu.memory_space<vmem>>, vector<4x32xf32>
    %c0_19 = arith.constant 0 : index
    %c0_20 = arith.constant 0 : index
    %40 = vector.load %arg9[%c0_19, %c0_20] : memref<4x1xf32, #tpu.memory_space<vmem>>, vector<4x1xf32>
    %cst_21 = arith.constant dense<0.000000e+00> : vector<4x128xf32>
    %41 = tpu.matmul %39, %38, %cst_21 {dimension_numbers = #tpu.dot_dimension_numbers<[1], [0], [0], [1], [0, 0, 1, 1], [], []>} : vector<4x32xf32>, vector<32x128xf32>, vector<4x128xf32> -> vector<4x128xf32>
    %42 = vector.broadcast %40 : vector<4x1xf32> to vector<4x128xf32>
    %43 = arith.addf %41, %42 : vector<4x128xf32>
    %cst_22 = arith.constant 0.000000e+00 : f32
    %44 = vector.broadcast %cst_22 : f32 to vector<4x128xf32>
    %45 = arith.maximumf %43, %44 : vector<4x128xf32>
    %c0_23 = arith.constant 0 : index
    %c0_24 = arith.constant 0 : index
    %46 = vector.load %arg10[%c0_23, %c0_24] : memref<4x128xf32, #tpu.memory_space<vmem>>, vector<4x128xf32>
    tpu.vector_store %arg10[%c0_23, %c0_24], %45 {strides = array<i32>} : memref<4x128xf32, #tpu.memory_space<vmem>>, vector<4x128xf32>,
    return
  }
  func.func @transform_0(%arg0: i32) -> (i32, i32) {
    %c0_i32 = arith.constant 0 : i32
    %c0_i32_0 = arith.constant 0 : i32
    return %c0_i32, %arg0 : i32, i32
  }
  func.func @transform_1(%arg0: i32) -> (i32, i32) {
    %c0_i32 = arith.constant 0 : i32
    %c0_i32_0 = arith.constant 0 : i32
    %c0_i32_1 = arith.constant 0 : i32
    return %c0_i32, %c0_i32_0 : i32, i32
  }
  func.func @transform_2(%arg0: i32) -> (i32, i32) {
    %c0_i32 = arith.constant 0 : i32
    %c0_i32_0 = arith.constant 0 : i32
    %c0_i32_1 = arith.constant 0 : i32
    return %c0_i32, %c0_i32_0 : i32, i32
  }
  func.func @transform_3(%arg0: i32) -> (i32, i32) {
    %c0_i32 = arith.constant 0 : i32
    %c0_i32_0 = arith.constant 0 : i32
    %c0_i32_1 = arith.constant 0 : i32
    return %c0_i32, %c0_i32_0 : i32, i32
  }
  func.func @transform_4(%arg0: i32) -> (i32, i32) {
    %c0_i32 = arith.constant 0 : i32
    %c0_i32_0 = arith.constant 0 : i32
    %c0_i32_1 = arith.constant 0 : i32
    return %c0_i32, %c0_i32_0 : i32, i32
  }
  func.func @transform_5(%arg0: i32) -> (i32, i32) {
    %c0_i32 = arith.constant 0 : i32
    %c0_i32_0 = arith.constant 0 : i32
    %c0_i32_1 = arith.constant 0 : i32
    return %c0_i32, %c0_i32_0 : i32, i32
  }
  func.func @transform_6(%arg0: i32) -> (i32, i32) {
    %c0_i32 = arith.constant 0 : i32
    %c0_i32_0 = arith.constant 0 : i32
    %c0_i32_1 = arith.constant 0 : i32
    return %c0_i32, %c0_i32_0 : i32, i32
  }
  func.func @transform_7(%arg0: i32) -> (i32, i32) {
    %c0_i32 = arith.constant 0 : i32
    %c0_i32_0 = arith.constant 0 : i32
    %c0_i32_1 = arith.constant 0 : i32
    return %c0_i32, %c0_i32_0 : i32, i32
  }
  func.func @transform_8(%arg0: i32) -> (i32, i32) {
    %c0_i32 = arith.constant 0 : i32
    %c0_i32_0 = arith.constant 0 : i32
    %c0_i32_1 = arith.constant 0 : i32
    return %c0_i32, %c0_i32_0 : i32, i32
  }
  func.func @transform_9(%arg0: i32) -> (i32, i32) {
    %c0_i32 = arith.constant 0 : i32
    %c0_i32_0 = arith.constant 0 : i32
    return %c0_i32, %arg0 : i32, i32
  }
}

</mosaic_0001>

<llo_original>
// kernel: tpu_custom_call.1
$region0: #{tpu_custom_call.1}
  #allocation0 [shape = 'u32[]', space=smem, size = 0x4, offset = 0x4, fixed_abs, tag = 'smem constant byte address 0x4 - core index']
  #allocation1 [shape = 'u32[144,128]{1,0:T(1,128)}', space=vmem, size = 0x12000, scoped, tag = 'internal scratch']
  %s0 = inlined_call_operand.vmem [shape: f32[3,128], index: 0, kind: input, shape index: {}]
  %s1 = inlined_call_operand.vmem [shape: f32[32,3], index: 1, kind: input, shape index: {}]
  %s2 = inlined_call_operand.vmem [shape: f32[32,1], index: 2, kind: input, shape index: {}]
  %s3 = inlined_call_operand.vmem [shape: f32[32,32], index: 3, kind: input, shape index: {}]
  %s4 = inlined_call_operand.vmem [shape: f32[32,1], index: 4, kind: input, shape index: {}]
  %s5 = inlined_call_operand.vmem [shape: f32[32,32], index: 5, kind: input, shape index: {}]
  %s6 = inlined_call_operand.vmem [shape: f32[32,1], index: 6, kind: input, shape index: {}]
  %s7 = inlined_call_operand.vmem [shape: f32[4,32], index: 7, kind: input, shape index: {}]
  %s8 = inlined_call_operand.vmem [shape: f32[4,1], index: 8, kind: input, shape index: {}]
  %s9 = inlined_call_operand.hbm [shape: f32[4,128], index: 9, kind: output, shape index: {}]
  %s10 = sld [smem:[#allocation0]]
  $region46: #{tpu_custom_call.1} parent=0
    _
  %s12 = ssub.s32 1, %s10
  %s13 = scalar_select 0, %s12, %s10
  $region1: #{tpu_custom_call.1} parent=0
    #allocation2 [shape = 'u8[2048]{0}', space=vmem, size = 0x800, scoped, tag = 'output window, operand 0, single buffered']
    #allocation3 [shape = 's32[1]{0}', space=sflag, size = 0x4, scoped, tag = 'scoped memory for tpu_custom_call.1']
    %14 = vsyncpa [#allocation3], 0
    // Predicated region
    $region2: #{tpu_custom_call.1} parent=1 // pred_check
      _
    $region3: #{tpu_custom_call.1} parent=1 // pred_check_branch
      %16 = sbr.rel (0) target = $region5
    $region4: #{tpu_custom_call.1} parent=1 // pred_region
      _
    $region5: #{tpu_custom_call.1} parent=1 // pred_fallthru
      _
    // Predicated region
    $region6: #{tpu_custom_call.1} parent=1 // pred_check
      _
    $region7: #{tpu_custom_call.1} parent=1 // pred_check_branch
      %18 = sbr.rel (0) target = $region9
    $region8: #{tpu_custom_call.1} parent=1 // pred_region
      _
    $region9: #{tpu_custom_call.1} parent=1 // pred_fallthru
      _
    // Predicated region
    $region10: #{tpu_custom_call.1} parent=1 // pred_check
      _
    $region11: #{tpu_custom_call.1} parent=1 // pred_check_branch
      %20 = sbr.rel (0) target = $region13
    $region12: #{tpu_custom_call.1} parent=1 // pred_region
      _
    $region13: #{tpu_custom_call.1} parent=1 // pred_fallthru
      _
    // Predicated region
    $region14: #{tpu_custom_call.1} parent=1 // pred_check
      _
    $region15: #{tpu_custom_call.1} parent=1 // pred_check_branch
      %22 = sbr.rel (0) target = $region17
    $region16: #{tpu_custom_call.1} parent=1 // pred_region
      _
    $region17: #{tpu_custom_call.1} parent=1 // pred_fallthru
      _
    // Predicated region
    $region18: #{tpu_custom_call.1} parent=1 // pred_check
      _
    $region19: #{tpu_custom_call.1} parent=1 // pred_check_branch
      %24 = sbr.rel (0) target = $region21
    $region20: #{tpu_custom_call.1} parent=1 // pred_region
      _
    $region21: #{tpu_custom_call.1} parent=1 // pred_fallthru
      _
    // Predicated region
    $region22: #{tpu_custom_call.1} parent=1 // pred_check
      _
    $region23: #{tpu_custom_call.1} parent=1 // pred_check_branch
      %26 = sbr.rel (0) target = $region25
    $region24: #{tpu_custom_call.1} parent=1 // pred_region
      _
    $region25: #{tpu_custom_call.1} parent=1 // pred_fallthru
      _
    // Predicated region
    $region26: #{tpu_custom_call.1} parent=1 // pred_check
      _
    $region27: #{tpu_custom_call.1} parent=1 // pred_check_branch
      %28 = sbr.rel (0) target = $region29
    $region28: #{tpu_custom_call.1} parent=1 // pred_region
      _
    $region29: #{tpu_custom_call.1} parent=1 // pred_fallthru
      _
    // Predicated region
    $region30: #{tpu_custom_call.1} parent=1 // pred_check
      _
    $region31: #{tpu_custom_call.1} parent=1 // pred_check_branch
      %30 = sbr.rel (0) target = $region33
    $region32: #{tpu_custom_call.1} parent=1 // pred_region
      _
    $region33: #{tpu_custom_call.1} parent=1 // pred_fallthru
      _
    // Predicated region
    $region34: #{tpu_custom_call.1} parent=1 // pred_check
      _
    $region35: #{tpu_custom_call.1} parent=1 // pred_check_branch
      %32 = sbr.rel (0) target = $region37
    $region36: #{tpu_custom_call.1} parent=1 // pred_region
      _
    $region37: #{tpu_custom_call.1} parent=1 // pred_fallthru
      _
    %v33 = vld [vmem:[%s0] sm:$0x7]
    %v34 = vld [vmem:[%s1] sm:$0xff]
    %v35 = vld [vmem:[%s1 + $0x8] sm:$0xff]
    %v36 = vld [vmem:[%s1 + $0x10] sm:$0xff]
    %v37 = vld [vmem:[%s1 + $0x18] sm:$0xff]
    %v38 = vld [vmem:[%s2] sm:$0xff]
    %v39 = vld [vmem:[%s2 + $0x8] sm:$0xff]
    %v40 = vld [vmem:[%s2 + $0x10] sm:$0xff]
    %v41 = vld [vmem:[%s2 + $0x18] sm:$0xff]
    %43 = vset.pattern.permute.xlu0 0
    %44 = vperm.xlu0 %43, %v38
    %v45 = vpop.permute.xlu0 %44
    %48 = vset.pattern.permute.xlu0 0
    %49 = vperm.xlu0 %48, %v39
    %v50 = vpop.permute.xlu0 %49
    %53 = vset.pattern.permute.xlu0 0
    %54 = vperm.xlu0 %53, %v40
    %v55 = vpop.permute.xlu0 %54
    %58 = vset.pattern.permute.xlu0 0
    %59 = vperm.xlu0 %58, %v41
    %v60 = vpop.permute.xlu0 %59
    %63 = vset.pattern.permute.xlu0 0
    %64 = vperm.xlu0 %63, %v34
    %v65 = vpop.permute.xlu0 %64
    %68 = vset.pattern.permute.xlu0 0
    %69 = vperm.xlu0 %68, %v35
    %v70 = vpop.permute.xlu0 %69
    %73 = vset.pattern.permute.xlu0 0
    %74 = vperm.xlu0 %73, %v36
    %v75 = vpop.permute.xlu0 %74
    %78 = vset.pattern.permute.xlu0 0
    %79 = vperm.xlu0 %78, %v37
    %v80 = vpop.permute.xlu0 %79
    %v82 = vlaneseq
    %v83 = vshrl.u32 %v82, 7
    %v84 = vsub.s32 0, %v83
    %v85 = vrot.slane %v33, %v84
    %v86 = vmul.f32 %v65, %v85
    %v87 = vmul.f32 %v70, %v85
    %v88 = vmul.f32 %v75, %v85
    %v89 = vmul.f32 %v80, %v85
    %v90 = vadd.f32 %v45, %v86
    %v91 = vadd.f32 %v50, %v87
    %v92 = vadd.f32 %v55, %v88
    %v93 = vadd.f32 %v60, %v89
    %94 = vset.pattern.permute.xlu0 1
    %95 = vperm.xlu0 %94, %v34
    %v96 = vpop.permute.xlu0 %95
    %98 = vset.pattern.permute.xlu0 1
    %99 = vperm.xlu0 %98, %v35
    %v100 = vpop.permute.xlu0 %99
    %102 = vset.pattern.permute.xlu0 1
    %103 = vperm.xlu0 %102, %v36
    %v104 = vpop.permute.xlu0 %103
    %106 = vset.pattern.permute.xlu0 1
    %107 = vperm.xlu0 %106, %v37
    %v108 = vpop.permute.xlu0 %107
    %v110 = vlaneseq
    %v111 = vshrl.u32 %v110, 7
    %v112 = vsub.s32 1, %v111
    %v113 = vrot.slane %v33, %v112
    %v114 = vmul.f32 %v96, %v113
    %v115 = vmul.f32 %v100, %v113
    %v116 = vmul.f32 %v104, %v113
    %v117 = vmul.f32 %v108, %v113
    %v118 = vadd.f32 %v90, %v114
    %v119 = vadd.f32 %v91, %v115
    %v120 = vadd.f32 %v92, %v116
    %v121 = vadd.f32 %v93, %v117
    %122 = vset.pattern.permute.xlu0 2
    %123 = vperm.xlu0 %122, %v34
    %v124 = vpop.permute.xlu0 %123
    %126 = vset.pattern.permute.xlu0 2
    %127 = vperm.xlu0 %126, %v35
    %v128 = vpop.permute.xlu0 %127
    %130 = vset.pattern.permute.xlu0 2
    %131 = vperm.xlu0 %130, %v36
    %v132 = vpop.permute.xlu0 %131
    %134 = vset.pattern.permute.xlu0 2
    %135 = vperm.xlu0 %134, %v37
    %v136 = vpop.permute.xlu0 %135
    %v138 = vlaneseq
    %v139 = vshrl.u32 %v138, 7
    %v140 = vsub.s32 2, %v139
    %v141 = vrot.slane %v33, %v140
    %v142 = vmul.f32 %v124, %v141
    %v143 = vmul.f32 %v128, %v141
    %v144 = vmul.f32 %v132, %v141
    %v145 = vmul.f32 %v136, %v141
    %v146 = vadd.f32 %v118, %v142
    %v147 = vadd.f32 %v119, %v143
    %v148 = vadd.f32 %v120, %v144
    %v149 = vadd.f32 %v121, %v145
    %v150 = vmax.f32 %v146, 0.0
    %v151 = vmax.f32 %v147, 0.0
    %v152 = vmax.f32 %v148, 0.0
    %v153 = vmax.f32 %v149, 0.0
    %v154 = vld [vmem:[%s3] sm:$0xff]
    %v155 = vld [vmem:[%s3 + $0x8] sm:$0xff]
    %v156 = vld [vmem:[%s3 + $0x10] sm:$0xff]
    %v157 = vld [vmem:[%s3 + $0x18] sm:$0xff]
    %v158 = vld [vmem:[%s4] sm:$0xff]
    %v159 = vld [vmem:[%s4 + $0x8] sm:$0xff]
    %v160 = vld [vmem:[%s4 + $0x10] sm:$0xff]
    %v161 = vld [vmem:[%s4 + $0x18] sm:$0xff]
    %163 = vset.pattern.permute.xlu0 0
    %164 = vperm.xlu0 %163, %v158
    %v165 = vpop.permute.xlu0 %164
    %168 = vset.pattern.permute.xlu0 0
    %169 = vperm.xlu0 %168, %v159
    %v170 = vpop.permute.xlu0 %169
    %173 = vset.pattern.permute.xlu0 0
    %174 = vperm.xlu0 %173, %v160
    %v175 = vpop.permute.xlu0 %174
    %178 = vset.pattern.permute.xlu0 0
    %179 = vperm.xlu0 %178, %v161
    %v180 = vpop.permute.xlu0 %179
    %vm182 = vcmask 261120
    %v184 = vsel %vm182, %v154, 0
    %v187 = vsel %vm182, %v155, 0
    %v190 = vsel %vm182, %v156, 0
    %v193 = vsel %vm182, %v157, 0
    %195 = vmatprep.subr.mxu0 0.0
    %196 = vmatpush1.msra.mxu0 0.0
    %197 = vmatprep.subr.mxu0 0.0
    %198 = vmatpush1.msra.mxu0 0.0
    %199 = vmatprep.subr.mxu0 0.0
    %200 = vmatpush1.msra.mxu0 0.0
    %201 = vmatprep.subr.mxu0 0.0
    %202 = vmatpush1.msra.mxu0 0.0
    %203 = vmatprep.subr.mxu0 0.0
    %204 = vmatpush1.msra.mxu0 0.0
    %205 = vmatprep.subr.mxu0 0.0
    %206 = vmatpush1.msra.mxu0 0.0
    %207 = vmatprep.subr.mxu0 0.0
    %208 = vmatpush1.msra.mxu0 0.0
    %209 = vmatprep.subr.mxu0 0.0
    %210 = vmatpush1.msra.mxu0 0.0
    %211 = vmatprep.subr.mxu0 0.0
    %212 = vmatpush1.msra.mxu0 0.0
    %213 = vmatprep.subr.mxu0 0.0
    %214 = vmatpush1.msra.mxu0 0.0
    %215 = vmatprep.subr.mxu0 0.0
    %216 = vmatpush1.msra.mxu0 0.0
    %217 = vmatprep.subr.mxu0 0.0
    %218 = vmatpush1.msra.mxu0 0.0
    %219 = vmatprep.subr.mxu0 0.0
    %220 = vmatpush1.msra.mxu0 %v153
    %221 = vmatprep.subr.mxu0 0.0
    %222 = vmatpush1.msra.mxu0 %v152
    %223 = vmatprep.subr.mxu0 0.0
    %224 = vmatpush1.msra.mxu0 %v151
    %225 = vmatprep.subr.mxu0 0.0
    %226 = vmatpush1.msra.mxu0 %v150
    %227 = vmatprep.subr.mxu0 0.0
    %228 = vmatpush2.msra.mxu0 0.0
    %229 = vmatprep.subr.mxu0 0.0
    %230 = vmatpush2.msra.mxu0 0.0
    %231 = vmatprep.subr.mxu0 0.0
    %232 = vmatpush2.msra.mxu0 0.0
    %233 = vmatprep.subr.mxu0 0.0
    %234 = vmatpush2.msra.mxu0 0.0
    %235 = vmatprep.subr.mxu0 0.0
    %236 = vmatpush2.msra.mxu0 0.0
    %237 = vmatprep.subr.mxu0 0.0
    %238 = vmatpush2.msra.mxu0 0.0
    %239 = vmatprep.subr.mxu0 0.0
    %240 = vmatpush2.msra.mxu0 0.0
    %241 = vmatprep.subr.mxu0 0.0
    %242 = vmatpush2.msra.mxu0 0.0
    %243 = vmatprep.subr.mxu0 0.0
    %244 = vmatpush2.msra.mxu0 0.0
    %245 = vmatprep.subr.mxu0 0.0
    %246 = vmatpush2.msra.mxu0 0.0
    %247 = vmatprep.subr.mxu0 0.0
    %248 = vmatpush2.msra.mxu0 0.0
    %249 = vmatprep.subr.mxu0 0.0
    %250 = vmatpush2.msra.mxu0 0.0
    %251 = vmatprep.subr.mxu0 0.0
    %252 = vmatpush2.msra.mxu0 0.0
    %253 = vmatprep.subr.mxu0 0.0
    %254 = vmatpush2.msra.mxu0 0.0
    %255 = vmatprep.subr.mxu0 0.0
    %256 = vmatpush2.msra.mxu0 0.0
    %257 = vmatprep.subr.mxu0 0.0
    %258 = vmatpush2.msra.mxu0 0.0
    %259 = vmatprep.mubr.f32.mxu0 0.0
    %260 = vmatmul.mubr.f32.gmra.mxu0 %v184
    %v261 = vpop.f32.mrf.mxu0
    %v262 = vadd.f32 %v165, %v261
    %v263 = vpop.f32.mrf.mxu0
    %264 = vmatprep.mubr.f32.mxu0 0.0
    %265 = vmatmul.mubr.f32.gmra.mxu0 %v187
    %v266 = vpop.f32.mrf.mxu0
    %v267 = vadd.f32 %v170, %v266
    %v268 = vpop.f32.mrf.mxu0
    %269 = vmatprep.mubr.f32.mxu0 0.0
    %270 = vmatmul.mubr.f32.gmra.mxu0 %v190
    %v271 = vpop.f32.mrf.mxu0
    %v272 = vadd.f32 %v175, %v271
    %v273 = vpop.f32.mrf.mxu0
    %274 = vmatprep.mubr.f32.mxu0 0.0
    %275 = vmatmul.mubr.f32.gmra.mxu0 %v193
    %v276 = vpop.f32.mrf.mxu0
    %v277 = vadd.f32 %v180, %v276
    %v278 = vpop.f32.mrf.mxu0
    %279 = vdwg.mxu0
    %v280 = vmax.f32 %v262, 0.0
    %v281 = vmax.f32 %v267, 0.0
    %v282 = vmax.f32 %v272, 0.0
    %v283 = vmax.f32 %v277, 0.0
    %v284 = vld [vmem:[%s5] sm:$0xff]
    %v285 = vld [vmem:[%s5 + $0x8] sm:$0xff]
    %v286 = vld [vmem:[%s5 + $0x10] sm:$0xff]
    %v287 = vld [vmem:[%s5 + $0x18] sm:$0xff]
    %v288 = vld [vmem:[%s6] sm:$0xff]
    %v289 = vld [vmem:[%s6 + $0x8] sm:$0xff]
    %v290 = vld [vmem:[%s6 + $0x10] sm:$0xff]
    %v291 = vld [vmem:[%s6 + $0x18] sm:$0xff]
    %293 = vset.pattern.permute.xlu0 0
    %294 = vperm.xlu0 %293, %v288
    %v295 = vpop.permute.xlu0 %294
    %298 = vset.pattern.permute.xlu0 0
    %299 = vperm.xlu0 %298, %v289
    %v300 = vpop.permute.xlu0 %299
    %303 = vset.pattern.permute.xlu0 0
    %304 = vperm.xlu0 %303, %v290
    %v305 = vpop.permute.xlu0 %304
    %308 = vset.pattern.permute.xlu0 0
    %309 = vperm.xlu0 %308, %v291
    %v310 = vpop.permute.xlu0 %309
    %v313 = vsel %vm182, %v284, 0
    %v316 = vsel %vm182, %v285, 0
    %v319 = vsel %vm182, %v286, 0
    %v322 = vsel %vm182, %v287, 0
    %324 = vmatprep.subr.mxu0 0.0
    %325 = vmatpush1.msra.mxu0 0.0
    %326 = vmatprep.subr.mxu0 0.0
    %327 = vmatpush1.msra.mxu0 0.0
    %328 = vmatprep.subr.mxu0 0.0
    %329 = vmatpush1.msra.mxu0 0.0
    %330 = vmatprep.subr.mxu0 0.0
    %331 = vmatpush1.msra.mxu0 0.0
    %332 = vmatprep.subr.mxu0 0.0
    %333 = vmatpush1.msra.mxu0 0.0
    %334 = vmatprep.subr.mxu0 0.0
    %335 = vmatpush1.msra.mxu0 0.0
    %336 = vmatprep.subr.mxu0 0.0
    %337 = vmatpush1.msra.mxu0 0.0
    %338 = vmatprep.subr.mxu0 0.0
    %339 = vmatpush1.msra.mxu0 0.0
    %340 = vmatprep.subr.mxu0 0.0
    %341 = vmatpush1.msra.mxu0 0.0
    %342 = vmatprep.subr.mxu0 0.0
    %343 = vmatpush1.msra.mxu0 0.0
    %344 = vmatprep.subr.mxu0 0.0
    %345 = vmatpush1.msra.mxu0 0.0
    %346 = vmatprep.subr.mxu0 0.0
    %347 = vmatpush1.msra.mxu0 0.0
    %348 = vmatprep.subr.mxu0 0.0
    %349 = vmatpush1.msra.mxu0 %v283
    %350 = vmatprep.subr.mxu0 0.0
    %351 = vmatpush1.msra.mxu0 %v282
    %352 = vmatprep.subr.mxu0 0.0
    %353 = vmatpush1.msra.mxu0 %v281
    %354 = vmatprep.subr.mxu0 0.0
    %355 = vmatpush1.msra.mxu0 %v280
    %356 = vmatprep.subr.mxu0 0.0
    %357 = vmatpush2.msra.mxu0 0.0
    %358 = vmatprep.subr.mxu0 0.0
    %359 = vmatpush2.msra.mxu0 0.0
    %360 = vmatprep.subr.mxu0 0.0
    %361 = vmatpush2.msra.mxu0 0.0
    %362 = vmatprep.subr.mxu0 0.0
    %363 = vmatpush2.msra.mxu0 0.0
    %364 = vmatprep.subr.mxu0 0.0
    %365 = vmatpush2.msra.mxu0 0.0
    %366 = vmatprep.subr.mxu0 0.0
    %367 = vmatpush2.msra.mxu0 0.0
    %368 = vmatprep.subr.mxu0 0.0
    %369 = vmatpush2.msra.mxu0 0.0
    %370 = vmatprep.subr.mxu0 0.0
    %371 = vmatpush2.msra.mxu0 0.0
    %372 = vmatprep.subr.mxu0 0.0
    %373 = vmatpush2.msra.mxu0 0.0
    %374 = vmatprep.subr.mxu0 0.0
    %375 = vmatpush2.msra.mxu0 0.0
    %376 = vmatprep.subr.mxu0 0.0
    %377 = vmatpush2.msra.mxu0 0.0
    %378 = vmatprep.subr.mxu0 0.0
    %379 = vmatpush2.msra.mxu0 0.0
    %380 = vmatprep.subr.mxu0 0.0
    %381 = vmatpush2.msra.mxu0 0.0
    %382 = vmatprep.subr.mxu0 0.0
    %383 = vmatpush2.msra.mxu0 0.0
    %384 = vmatprep.subr.mxu0 0.0
    %385 = vmatpush2.msra.mxu0 0.0
    %386 = vmatprep.subr.mxu0 0.0
    %387 = vmatpush2.msra.mxu0 0.0
    %388 = vmatprep.mubr.f32.mxu0 0.0
    %389 = vmatmul.mubr.f32.gmra.mxu0 %v313
    %v390 = vpop.f32.mrf.mxu0
    %v391 = vadd.f32 %v295, %v390
    %v392 = vpop.f32.mrf.mxu0
    %393 = vmatprep.mubr.f32.mxu0 0.0
    %394 = vmatmul.mubr.f32.gmra.mxu0 %v316
    %v395 = vpop.f32.mrf.mxu0
    %v396 = vadd.f32 %v300, %v395
    %v397 = vpop.f32.mrf.mxu0
    %398 = vmatprep.mubr.f32.mxu0 0.0
    %399 = vmatmul.mubr.f32.gmra.mxu0 %v319
    %v400 = vpop.f32.mrf.mxu0
    %v401 = vadd.f32 %v305, %v400
    %v402 = vpop.f32.mrf.mxu0
    %403 = vmatprep.mubr.f32.mxu0 0.0
    %404 = vmatmul.mubr.f32.gmra.mxu0 %v322
    %v405 = vpop.f32.mrf.mxu0
    %v406 = vadd.f32 %v310, %v405
    %v407 = vpop.f32.mrf.mxu0
    %408 = vdwg.mxu0
    %v409 = vmax.f32 %v391, 0.0
    %v410 = vmax.f32 %v396, 0.0
    %v411 = vmax.f32 %v401, 0.0
    %v412 = vmax.f32 %v406, 0.0
    %v413 = vld [vmem:[%s7] sm:$0xf]
    %v414 = vld [vmem:[%s8] sm:$0xf]
    %416 = vset.pattern.permute.xlu0 0
    %417 = vperm.xlu0 %416, %v414
    %v418 = vpop.permute.xlu0 %417
    %v421 = vsel %vm182, %v413, 0
    %423 = vmatprep.subr.mxu0 0.0
    %424 = vmatpush1.msra.mxu0 0.0
    %425 = vmatprep.subr.mxu0 0.0
    %426 = vmatpush1.msra.mxu0 0.0
    %427 = vmatprep.subr.mxu0 0.0
    %428 = vmatpush1.msra.mxu0 0.0
    %429 = vmatprep.subr.mxu0 0.0
    %430 = vmatpush1.msra.mxu0 0.0
    %431 = vmatprep.subr.mxu0 0.0
    %432 = vmatpush1.msra.mxu0 0.0
    %433 = vmatprep.subr.mxu0 0.0
    %434 = vmatpush1.msra.mxu0 0.0
    %435 = vmatprep.subr.mxu0 0.0
    %436 = vmatpush1.msra.mxu0 0.0
    %437 = vmatprep.subr.mxu0 0.0
    %438 = vmatpush1.msra.mxu0 0.0
    %439 = vmatprep.subr.mxu0 0.0
    %440 = vmatpush1.msra.mxu0 0.0
    %441 = vmatprep.subr.mxu0 0.0
    %442 = vmatpush1.msra.mxu0 0.0
    %443 = vmatprep.subr.mxu0 0.0
    %444 = vmatpush1.msra.mxu0 0.0
    %445 = vmatprep.subr.mxu0 0.0
    %446 = vmatpush1.msra.mxu0 0.0
    %447 = vmatprep.subr.mxu0 0.0
    %448 = vmatpush1.msra.mxu0 %v412
    %449 = vmatprep.subr.mxu0 0.0
    %450 = vmatpush1.msra.mxu0 %v411
    %451 = vmatprep.subr.mxu0 0.0
    %452 = vmatpush1.msra.mxu0 %v410
    %453 = vmatprep.subr.mxu0 0.0
    %454 = vmatpush1.msra.mxu0 %v409
    %455 = vmatprep.subr.mxu0 0.0
    %456 = vmatpush2.msra.mxu0 0.0
    %457 = vmatprep.subr.mxu0 0.0
    %458 = vmatpush2.msra.mxu0 0.0
    %459 = vmatprep.subr.mxu0 0.0
    %460 = vmatpush2.msra.mxu0 0.0
    %461 = vmatprep.subr.mxu0 0.0
    %462 = vmatpush2.msra.mxu0 0.0
    %463 = vmatprep.subr.mxu0 0.0
    %464 = vmatpush2.msra.mxu0 0.0
    %465 = vmatprep.subr.mxu0 0.0
    %466 = vmatpush2.msra.mxu0 0.0
    %467 = vmatprep.subr.mxu0 0.0
    %468 = vmatpush2.msra.mxu0 0.0
    %469 = vmatprep.subr.mxu0 0.0
    %470 = vmatpush2.msra.mxu0 0.0
    %471 = vmatprep.subr.mxu0 0.0
    %472 = vmatpush2.msra.mxu0 0.0
    %473 = vmatprep.subr.mxu0 0.0
    %474 = vmatpush2.msra.mxu0 0.0
    %475 = vmatprep.subr.mxu0 0.0
    %476 = vmatpush2.msra.mxu0 0.0
    %477 = vmatprep.subr.mxu0 0.0
    %478 = vmatpush2.msra.mxu0 0.0
    %479 = vmatprep.subr.mxu0 0.0
    %480 = vmatpush2.msra.mxu0 0.0
    %481 = vmatprep.subr.mxu0 0.0
    %482 = vmatpush2.msra.mxu0 0.0
    %483 = vmatprep.subr.mxu0 0.0
    %484 = vmatpush2.msra.mxu0 0.0
    %485 = vmatprep.subr.mxu0 0.0
    %486 = vmatpush2.msra.mxu0 0.0
    %487 = vmatprep.mubr.f32.mxu0 0.0
    %488 = vmatmul.mubr.f32.gmra.mxu0 %v421
    %v489 = vpop.f32.mrf.mxu0
    %v490 = vadd.f32 %v418, %v489
    %v491 = vpop.f32.mrf.mxu0
    %492 = vdwg.mxu0
    %v493 = vmax.f32 %v490, 0.0
    %494 = vst [vmem:[#allocation2] sm:$0xf] %v493
    // Predicated region
    $region38: #{tpu_custom_call.1} parent=1 // pred_check
      _
    $region39: #{tpu_custom_call.1} parent=1 // pred_check_branch
      %496 = sbr.rel (0) target = $region41
    $region40: #{tpu_custom_call.1} parent=1 // pred_region
      %s498 = ssub.s32 64, 64
      %499 = vsyncadd [#allocation3], %s498
      %s501 = sshll.u32 [#allocation2], 4
      %s502 = int_to_ptr.vmem [resolvable:$true] %s501
      %504 = dma.vmem_to_hbm [thread:$0]  %s502, 64, %s9, [#allocation3]
    $region41: #{tpu_custom_call.1} parent=1 // pred_fallthru
      _
    // Predicated region
    $region42: #{tpu_custom_call.1} parent=1 // pred_check
      _
    $region43: #{tpu_custom_call.1} parent=1 // pred_check_branch
      %506 = sbr.rel (0) target = $region45
    $region44: #{tpu_custom_call.1} parent=1 // pred_region
      %507 = dma.done [#allocation3], 64
    $region45: #{tpu_custom_call.1} parent=1 // pred_fallthru
      _
    %508 = vsyncpa [#allocation3], 1

</llo_original>
